<compile_context>
chip_gen: v6e
topology: v6e:2x2x1
jax: 0.10.0
libtpu: 0.0.40
codegen_flags: <defaults>
</compile_context>

<pallas_src>
import functools

import jax
import jax.numpy as jnp
from jax.experimental import pallas as pl
from jax.experimental.pallas import tpu as pltpu


def _round_up(x, m):
    return ((x + m - 1) // m) * m


# --------------------------------------------------------------------------
# Fused Pallas kernel: all Supernet layers in one invocation.
#   p_ref : [n_prop, N, N]      bf16   (deduplicated propagation matrices)
#   x_ref : [N, F_pad]          bf16   (zero-padded input features)
#   w_ref : [n_layers, F_pad, F_pad] bf16 (zero-padded weights)
#   b_ref : [n_layers, 1, F_pad]     f32  (zero-padded biases)
#   o_ref : [N, F_pad]          f32   (final layer output, padded)
# --------------------------------------------------------------------------
def _supernet_kernel(p_ref, x_ref, w_ref, b_ref, o_ref, *,
                     layer_cfg, n_classes, bn_eps):
    h = x_ref[...].astype(jnp.float32)            # [N, F_pad], stays on-chip

    for li, cfg in enumerate(layer_cfg):
        w = w_ref[li]                             # [F_pad, F_pad] bf16
        b = b_ref[li]                             # [1, F_pad]     f32
        h_lo = h.astype(jnp.bfloat16)

        if cfg["xw_first"]:
            # feature transform first (cheaper when true f_out <= f_in)
            y = jnp.dot(h_lo, w, preferred_element_type=jnp.float32)
            if cfg["use_prop"]:
                y = jnp.dot(p_ref[cfg["p_idx"]], y.astype(jnp.bfloat16),
                            preferred_element_type=jnp.float32)
        else:
            if cfg["use_prop"]:
                agg = jnp.dot(p_ref[cfg["p_idx"]], h_lo,
                              preferred_element_type=jnp.float32)
                y = jnp.dot(agg.astype(jnp.bfloat16), w,
                            preferred_element_type=jnp.float32)
            else:
                y = jnp.dot(h_lo, w, preferred_element_type=jnp.float32)
        y = y + b

        if cfg["use_bn"]:
            # BatchNorm1d with batch statistics (gamma=1, beta=0).
            # TODO(synk): eval-mode running_mean/running_var not modeled.
            mean = jnp.mean(y, axis=0, keepdims=True)
            var = jnp.mean(jnp.square(y - mean), axis=0, keepdims=True)
            y = (y - mean) * jax.lax.rsqrt(var + bn_eps)

        if cfg["use_relu"]:
            y = jnp.maximum(y, 0.0)

        if cfg["use_lsm"]:
            # mask padded class columns before log_softmax
            col = jax.lax.broadcasted_iota(jnp.int32, y.shape, 1)
            y = jnp.where(col < n_classes, y, -1e30)
            m = jnp.max(y, axis=-1, keepdims=True)
            z = y - m
            lse = jnp.log(jnp.sum(jnp.exp(z), axis=-1, keepdims=True))
            y = z - lse

        h = y

    o_ref[...] = h.astype(o_ref.dtype)


# --------------------------------------------------------------------------
# Glue: dense per-op propagation matrices from edge_index (plain JAX)
# --------------------------------------------------------------------------
def _build_adjacency(edge_index, n_nodes):
    src, dst = edge_index[0], edge_index[1]
    # .add (not .set) so parallel edges are counted like PyG sum/mean agg.
    adj = jnp.zeros((n_nodes, n_nodes), jnp.float32).at[dst, src].add(1.0)
    eye = jnp.eye(n_nodes, dtype=jnp.float32)
    return adj, eye


def build_propagation_matrix(adj, eye, op):
    if op == "gin":
        return eye + adj                     # (1 + eps) x_i + sum_j x_j, eps=0
    if op == "gcn":
        a_hat = adj + eye
        deg = jnp.sum(a_hat, axis=1)
        d_inv_sqrt = jnp.where(deg > 0, jax.lax.rsqrt(deg), 0.0)
        return a_hat * d_inv_sqrt[:, None] * d_inv_sqrt[None, :]
    # mean-aggregation family: 'sage', 'graph', 'gatv2' (approx)
    deg = jnp.sum(adj, axis=1)
    d_inv = jnp.where(deg > 0, 1.0 / deg, 0.0)
    mean_adj = adj * d_inv[:, None]
    if op == "sage":
        return eye + mean_adj
    return mean_adj                          # 'graph', 'gatv2' (approximation)


# --------------------------------------------------------------------------
# Supernet forward (single fused pallas_call)
# --------------------------------------------------------------------------
def supernet_forward(x, edge_index, weights, biases, arch):
    n_nodes, n_input = x.shape
    n_layers = len(weights)
    n_output = weights[-1].shape[1]

    # lane-dense feature width (pad every feature dim to a multiple of 128)
    f_pad = _round_up(max([n_input] + [max(w.shape) for w in weights]), 128)

    # distinct propagation matrices, built once (deduplicated per op type)
    prop_ops = []
    for a in arch:
        if a != "linear" and a not in prop_ops:
            prop_ops.append(a)
    if prop_ops:
        adj, eye = _build_adjacency(edge_index, n_nodes)
        p_stack = jnp.stack(
            [build_propagation_matrix(adj, eye, op) for op in prop_ops]
        ).astype(jnp.bfloat16)
    else:
        p_stack = jnp.zeros((1, n_nodes, n_nodes), jnp.bfloat16)  # unused dummy
    p_index = {op: k for k, op in enumerate(prop_ops)}

    # zero-pad & stack parameters to a uniform [F_pad, F_pad] layout
    w_stack = jnp.stack([
        jnp.zeros((f_pad, f_pad), jnp.float32)
           .at[:w.shape[0], :w.shape[1]].set(w)
        for w in weights
    ]).astype(jnp.bfloat16)
    b_stack = jnp.stack([
        jnp.zeros((1, f_pad), jnp.float32).at[0, :b.shape[0]].set(b)
        for b in biases
    ])                                            # [n_layers, 1, f_pad] f32
    x_pad = (jnp.zeros((n_nodes, f_pad), jnp.float32)
                .at[:, :n_input].set(x.astype(jnp.float32))
                .astype(jnp.bfloat16))

    # static per-layer configuration baked into the kernel
    layer_cfg = []
    for i, a in enumerate(arch):
        is_last = i == n_layers - 1
        f_in_t, f_out_t = weights[i].shape
        layer_cfg.append(dict(
            use_prop=(a != "linear"),
            p_idx=p_index.get(a, 0),
            xw_first=(f_out_t <= f_in_t),   # re-associate when f_out <= f_in
            use_bn=not is_last,
            use_relu=not is_last,
            use_lsm=is_last,
        ))

    kernel = functools.partial(
        _supernet_kernel,
        layer_cfg=tuple(layer_cfg),
        n_classes=n_output,
        bn_eps=1e-5,
    )

    out_bytes = n_nodes * f_pad * 4
    in_bytes = (p_stack.size * 2 + x_pad.size * 2
                + w_stack.size * 2 + b_stack.size * 4)
    vmem_limit = int(min(max(2 * (in_bytes + out_bytes) + (4 << 20),
                             16 << 20), 48 << 20))

    out_pad = pl.pallas_call(
        kernel,
        out_shape=jax.ShapeDtypeStruct((n_nodes, f_pad), jnp.float32),
        grid_spec=pltpu.PrefetchScalarGridSpec(
            num_scalar_prefetch=0,
            grid=(1,),
            in_specs=[
                pl.BlockSpec(p_stack.shape, lambda i: (0, 0, 0)),   # P stack
                pl.BlockSpec(x_pad.shape, lambda i: (0, 0)),        # X
                pl.BlockSpec(w_stack.shape, lambda i: (0, 0, 0)),   # W stack
                pl.BlockSpec(b_stack.shape, lambda i: (0, 0, 0)),   # b stack
            ],
            out_specs=pl.BlockSpec((n_nodes, f_pad), lambda i: (0, 0)),
        ),
        compiler_params=pltpu.CompilerParams(
            dimension_semantics=("arbitrary",),
            vmem_limit_bytes=vmem_limit,
        ),
    )(p_stack, x_pad, w_stack, b_stack)

    return out_pad[:, :n_output]


def init_params(key, n_layers, n_input, n_hidden, n_output):
    weights, biases = [], []
    for i in range(n_layers):
        in_feat = n_input if i == 0 else n_hidden
        out_feat = n_hidden if i < n_layers - 1 else n_output
        key, kw = jax.random.split(key)
        scale = (2.0 / (in_feat + out_feat)) ** 0.5
        weights.append(scale * jax.random.normal(kw, (in_feat, out_feat),
                                                 jnp.float32))
        biases.append(jnp.zeros((out_feat,), jnp.float32))
    return weights, biases


if __name__ == "__main__":
    key = jax.random.PRNGKey(0)

    # small graph: 16 nodes, 16 input feats, 32 hidden, 8 classes, 3 layers
    n_nodes, n_input, n_hidden, n_output, n_layers = 16, 16, 32, 8, 3

    key, kx, ke = jax.random.split(key, 3)
    x = jax.random.normal(kx, (n_nodes, n_input), jnp.float32)
    n_edges = 48
    edge_index = jax.random.randint(ke, (2, n_edges), 0, n_nodes, jnp.int32)

    weights, biases = init_params(key, n_layers, n_input, n_hidden, n_output)

    # arch selects one operator per layer from the search space
    arch = ["gcn", "sage", "linear"]

    out = supernet_forward(x, edge_index, weights, biases, arch)
    out = jax.block_until_ready(out)

    assert out.shape == (n_nodes, n_output)
    # rows of log_softmax must sum (in prob space) to ~1
    assert bool(jnp.all(jnp.abs(jnp.sum(jnp.exp(out), axis=-1) - 1.0) < 1e-4))
    assert bool(jnp.all(jnp.isfinite(out)))

    print("KERNEL_OK")
</pallas_src>

<mosaic_0001>
module attributes {stable_mosaic.version = 11 : i64} {
  func.func @_supernet_kernel(%arg0: i32, %arg1: memref<2x16x16xbf16, #tpu.memory_space<vmem>>, %arg2: memref<16x128xbf16, #tpu.memory_space<vmem>>, %arg3: memref<3x128x128xbf16, #tpu.memory_space<vmem>>, %arg4: memref<3x1x128xf32, #tpu.memory_space<vmem>>, %arg5: memref<16x128xf32, #tpu.memory_space<vmem>>) attributes {dimension_semantics = [#tpu.dimension_semantics<arbitrary>], iteration_bounds = array<i64: 1>, scalar_prefetch = 0 : i64, scratch_operands = 0 : i64, tpu.core_type = #tpu.core_type<tc>, window_params = [{pipeline_mode = #tpu.pipeline_mode<synchronous>, transform_indices = @transform_0, window_bounds = array<i64: 2, 16, 16>}, {pipeline_mode = #tpu.pipeline_mode<synchronous>, transform_indices = @transform_1, window_bounds = array<i64: 16, 128>}, {pipeline_mode = #tpu.pipeline_mode<synchronous>, transform_indices = @transform_2, window_bounds = array<i64: 3, 128, 128>}, {pipeline_mode = #tpu.pipeline_mode<synchronous>, transform_indices = @transform_3, window_bounds = array<i64: 3, 1, 128>}, {pipeline_mode = #tpu.pipeline_mode<synchronous>, transform_indices = @transform_4, window_bounds = array<i64: 16, 128>}]} {
    %c0 = arith.constant 0 : index
    %c0_0 = arith.constant 0 : index
    %0 = vector.load %arg2[%c0, %c0_0] : memref<16x128xbf16, #tpu.memory_space<vmem>>, vector<16x128xbf16>
    %1 = arith.extf %0 : vector<16x128xbf16> to vector<16x128xf32>
    %c0_1 = arith.constant 0 : index
    %c0_2 = arith.constant 0 : index
    %c0_3 = arith.constant 0 : index
    %2 = vector.load %arg3[%c0_1, %c0_2, %c0_3] : memref<3x128x128xbf16, #tpu.memory_space<vmem>>, vector<1x128x128xbf16>
    %3 = vector.shape_cast %2 : vector<1x128x128xbf16> to vector<128x128xbf16>
    %c0_4 = arith.constant 0 : index
    %c0_5 = arith.constant 0 : index
    %c0_6 = arith.constant 0 : index
    %4 = vector.load %arg4[%c0_4, %c0_5, %c0_6] : memref<3x1x128xf32, #tpu.memory_space<vmem>>, vector<1x1x128xf32>
    %5 = vector.shape_cast %4 : vector<1x1x128xf32> to vector<1x128xf32>
    %6 = arith.truncf %1 : vector<16x128xf32> to vector<16x128xbf16>
    %c0_7 = arith.constant 0 : index
    %c0_8 = arith.constant 0 : index
    %c0_9 = arith.constant 0 : index
    %7 = vector.load %arg1[%c0_7, %c0_8, %c0_9] : memref<2x16x16xbf16, #tpu.memory_space<vmem>>, vector<1x16x16xbf16>
    %8 = vector.shape_cast %7 : vector<1x16x16xbf16> to vector<16x16xbf16>
    %cst = arith.constant dense<0.000000e+00> : vector<16x128xf32>
    %9 = tpu.matmul %8, %6, %cst {dimension_numbers = #tpu.dot_dimension_numbers<[1], [0], [0], [1], [0, 0, 1, 1], [], []>} : vector<16x16xbf16>, vector<16x128xbf16>, vector<16x128xf32> -> vector<16x128xf32>
    %10 = arith.truncf %9 : vector<16x128xf32> to vector<16x128xbf16>
    %cst_10 = arith.constant dense<0.000000e+00> : vector<16x128xf32>
    %11 = tpu.matmul %10, %3, %cst_10 {dimension_numbers = #tpu.dot_dimension_numbers<[1], [0], [0], [1], [0, 0, 1, 1], [], []>} : vector<16x128xbf16>, vector<128x128xbf16>, vector<16x128xf32> -> vector<16x128xf32>
    %12 = vector.broadcast %5 : vector<1x128xf32> to vector<16x128xf32>
    %13 = arith.addf %11, %12 : vector<16x128xf32>
    %cst_11 = arith.constant dense<0.000000e+00> : vector<128xf32>
    %14 = vector.multi_reduction <add>, %13, %cst_11 [0] : vector<16x128xf32> to vector<128xf32>
    %15 = vector.shape_cast %14 : vector<128xf32> to vector<1x128xf32>
    %cst_12 = arith.constant 1.600000e+01 : f32
    %16 = vector.broadcast %cst_12 : f32 to vector<1x128xf32>
    %17 = arith.divf %15, %16 : vector<1x128xf32>
    %18 = vector.broadcast %17 : vector<1x128xf32> to vector<16x128xf32>
    %19 = arith.subf %13, %18 : vector<16x128xf32>
    %20 = arith.mulf %19, %19 : vector<16x128xf32>
    %cst_13 = arith.constant dense<0.000000e+00> : vector<128xf32>
    %21 = vector.multi_reduction <add>, %20, %cst_13 [0] : vector<16x128xf32> to vector<128xf32>
    %22 = vector.shape_cast %21 : vector<128xf32> to vector<1x128xf32>
    %cst_14 = arith.constant 1.600000e+01 : f32
    %23 = vector.broadcast %cst_14 : f32 to vector<1x128xf32>
    %24 = arith.divf %22, %23 : vector<1x128xf32>
    %25 = vector.broadcast %17 : vector<1x128xf32> to vector<16x128xf32>
    %26 = arith.subf %13, %25 : vector<16x128xf32>
    %cst_15 = arith.constant 9.99999974E-6 : f32
    %27 = vector.broadcast %cst_15 : f32 to vector<1x128xf32>
    %28 = arith.addf %24, %27 : vector<1x128xf32>
    %29 = math.rsqrt %28 : vector<1x128xf32>
    %30 = vector.broadcast %29 : vector<1x128xf32> to vector<16x128xf32>
    %31 = arith.mulf %26, %30 : vector<16x128xf32>
    %cst_16 = arith.constant 0.000000e+00 : f32
    %32 = vector.broadcast %cst_16 : f32 to vector<16x128xf32>
    %33 = arith.maximumf %31, %32 : vector<16x128xf32>
    %c1 = arith.constant 1 : index
    %c0_17 = arith.constant 0 : index
    %c0_18 = arith.constant 0 : index
    %34 = vector.load %arg3[%c1, %c0_17, %c0_18] : memref<3x128x128xbf16, #tpu.memory_space<vmem>>, vector<1x128x128xbf16>
    %35 = vector.shape_cast %34 : vector<1x128x128xbf16> to vector<128x128xbf16>
    %c1_19 = arith.constant 1 : index
    %c0_20 = arith.constant 0 : index
    %c0_21 = arith.constant 0 : index
    %36 = vector.load %arg4[%c1_19, %c0_20, %c0_21] : memref<3x1x128xf32, #tpu.memory_space<vmem>>, vector<1x1x128xf32>
    %37 = vector.shape_cast %36 : vector<1x1x128xf32> to vector<1x128xf32>
    %38 = arith.truncf %33 : vector<16x128xf32> to vector<16x128xbf16>
    %cst_22 = arith.constant dense<0.000000e+00> : vector<16x128xf32>
    %39 = tpu.matmul %38, %35, %cst_22 {dimension_numbers = #tpu.dot_dimension_numbers<[1], [0], [0], [1], [0, 0, 1, 1], [], []>} : vector<16x128xbf16>, vector<128x128xbf16>, vector<16x128xf32> -> vector<16x128xf32>
    %c1_23 = arith.constant 1 : index
    %c0_24 = arith.constant 0 : index
    %c0_25 = arith.constant 0 : index
    %40 = vector.load %arg1[%c1_23, %c0_24, %c0_25] : memref<2x16x16xbf16, #tpu.memory_space<vmem>>, vector<1x16x16xbf16>
    %41 = vector.shape_cast %40 : vector<1x16x16xbf16> to vector<16x16xbf16>
    %42 = arith.truncf %39 : vector<16x128xf32> to vector<16x128xbf16>
    %cst_26 = arith.constant dense<0.000000e+00> : vector<16x128xf32>
    %43 = tpu.matmul %41, %42, %cst_26 {dimension_numbers = #tpu.dot_dimension_numbers<[1], [0], [0], [1], [0, 0, 1, 1], [], []>} : vector<16x16xbf16>, vector<16x128xbf16>, vector<16x128xf32> -> vector<16x128xf32>
    %44 = vector.broadcast %37 : vector<1x128xf32> to vector<16x128xf32>
    %45 = arith.addf %43, %44 : vector<16x128xf32>
    %cst_27 = arith.constant dense<0.000000e+00> : vector<128xf32>
    %46 = vector.multi_reduction <add>, %45, %cst_27 [0] : vector<16x128xf32> to vector<128xf32>
    %47 = vector.shape_cast %46 : vector<128xf32> to vector<1x128xf32>
    %cst_28 = arith.constant 1.600000e+01 : f32
    %48 = vector.broadcast %cst_28 : f32 to vector<1x128xf32>
    %49 = arith.divf %47, %48 : vector<1x128xf32>
    %50 = vector.broadcast %49 : vector<1x128xf32> to vector<16x128xf32>
    %51 = arith.subf %45, %50 : vector<16x128xf32>
    %52 = arith.mulf %51, %51 : vector<16x128xf32>
    %cst_29 = arith.constant dense<0.000000e+00> : vector<128xf32>
    %53 = vector.multi_reduction <add>, %52, %cst_29 [0] : vector<16x128xf32> to vector<128xf32>
    %54 = vector.shape_cast %53 : vector<128xf32> to vector<1x128xf32>
    %cst_30 = arith.constant 1.600000e+01 : f32
    %55 = vector.broadcast %cst_30 : f32 to vector<1x128xf32>
    %56 = arith.divf %54, %55 : vector<1x128xf32>
    %57 = vector.broadcast %49 : vector<1x128xf32> to vector<16x128xf32>
    %58 = arith.subf %45, %57 : vector<16x128xf32>
    %cst_31 = arith.constant 9.99999974E-6 : f32
    %59 = vector.broadcast %cst_31 : f32 to vector<1x128xf32>
    %60 = arith.addf %56, %59 : vector<1x128xf32>
    %61 = math.rsqrt %60 : vector<1x128xf32>
    %62 = vector.broadcast %61 : vector<1x128xf32> to vector<16x128xf32>
    %63 = arith.mulf %58, %62 : vector<16x128xf32>
    %cst_32 = arith.constant 0.000000e+00 : f32
    %64 = vector.broadcast %cst_32 : f32 to vector<16x128xf32>
    %65 = arith.maximumf %63, %64 : vector<16x128xf32>
    %c2 = arith.constant 2 : index
    %c0_33 = arith.constant 0 : index
    %c0_34 = arith.constant 0 : index
    %66 = vector.load %arg3[%c2, %c0_33, %c0_34] : memref<3x128x128xbf16, #tpu.memory_space<vmem>>, vector<1x128x128xbf16>
    %67 = vector.shape_cast %66 : vector<1x128x128xbf16> to vector<128x128xbf16>
    %c2_35 = arith.constant 2 : index
    %c0_36 = arith.constant 0 : index
    %c0_37 = arith.constant 0 : index
    %68 = vector.load %arg4[%c2_35, %c0_36, %c0_37] : memref<3x1x128xf32, #tpu.memory_space<vmem>>, vector<1x1x128xf32>
    %69 = vector.shape_cast %68 : vector<1x1x128xf32> to vector<1x128xf32>
    %70 = arith.truncf %65 : vector<16x128xf32> to vector<16x128xbf16>
    %cst_38 = arith.constant dense<0.000000e+00> : vector<16x128xf32>
    %71 = tpu.matmul %70, %67, %cst_38 {dimension_numbers = #tpu.dot_dimension_numbers<[1], [0], [0], [1], [0, 0, 1, 1], [], []>} : vector<16x128xbf16>, vector<128x128xbf16>, vector<16x128xf32> -> vector<16x128xf32>
    %72 = vector.broadcast %69 : vector<1x128xf32> to vector<16x128xf32>
    %73 = arith.addf %71, %72 : vector<16x128xf32>
    %74 = tpu.iota {dimensions = array<i32: 1>} : vector<16x128xi32>
    %c8_i32 = arith.constant 8 : i32
    %75 = vector.broadcast %c8_i32 : i32 to vector<16x128xi32>
    %76 = arith.cmpi slt, %74, %75 : vector<16x128xi32>
    %cst_39 = arith.constant -1.000000e+30 : f32
    %77 = vector.broadcast %cst_39 : f32 to vector<16x128xf32>
    %78 = arith.select %76, %73, %77 : vector<16x128xi1>, vector<16x128xf32>
    %cst_40 = arith.constant dense<0xFF800000> : vector<16xf32>
    %79 = vector.multi_reduction <maximumf>, %78, %cst_40 [1] : vector<16x128xf32> to vector<16xf32>
    %80 = vector.shape_cast %79 : vector<16xf32> to vector<16x1xf32>
    %81 = vector.broadcast %80 : vector<16x1xf32> to vector<16x128xf32>
    %82 = arith.subf %78, %81 : vector<16x128xf32>
    %83 = math.exp %82 : vector<16x128xf32>
    %cst_41 = arith.constant dense<0.000000e+00> : vector<16xf32>
    %84 = vector.multi_reduction <add>, %83, %cst_41 [1] : vector<16x128xf32> to vector<16xf32>
    %85 = vector.shape_cast %84 : vector<16xf32> to vector<16x1xf32>
    %86 = math.log %85 : vector<16x1xf32>
    %87 = vector.broadcast %86 : vector<16x1xf32> to vector<16x128xf32>
    %88 = arith.subf %82, %87 : vector<16x128xf32>
    %c0_42 = arith.constant 0 : index
    %c0_43 = arith.constant 0 : index
    %89 = vector.load %arg5[%c0_42, %c0_43] : memref<16x128xf32, #tpu.memory_space<vmem>>, vector<16x128xf32>
    tpu.vector_store %arg5[%c0_42, %c0_43], %88 {strides = array<i32>} : memref<16x128xf32, #tpu.memory_space<vmem>>, vector<16x128xf32>,
    return
  }
  func.func @transform_0(%arg0: i32) -> (i32, i32, i32) {
    %c0_i32 = arith.constant 0 : i32
    %c0_i32_0 = arith.constant 0 : i32
    %c0_i32_1 = arith.constant 0 : i32
    %c0_i32_2 = arith.constant 0 : i32
    return %c0_i32, %c0_i32_0, %c0_i32_1 : i32, i32, i32
  }
  func.func @transform_1(%arg0: i32) -> (i32, i32) {
    %c0_i32 = arith.constant 0 : i32
    %c0_i32_0 = arith.constant 0 : i32
    %c0_i32_1 = arith.constant 0 : i32
    return %c0_i32, %c0_i32_0 : i32, i32
  }
  func.func @transform_2(%arg0: i32) -> (i32, i32, i32) {
    %c0_i32 = arith.constant 0 : i32
    %c0_i32_0 = arith.constant 0 : i32
    %c0_i32_1 = arith.constant 0 : i32
    %c0_i32_2 = arith.constant 0 : i32
    return %c0_i32, %c0_i32_0, %c0_i32_1 : i32, i32, i32
  }
  func.func @transform_3(%arg0: i32) -> (i32, i32, i32) {
    %c0_i32 = arith.constant 0 : i32
    %c0_i32_0 = arith.constant 0 : i32
    %c0_i32_1 = arith.constant 0 : i32
    %c0_i32_2 = arith.constant 0 : i32
    return %c0_i32, %c0_i32_0, %c0_i32_1 : i32, i32, i32
  }
  func.func @transform_4(%arg0: i32) -> (i32, i32) {
    %c0_i32 = arith.constant 0 : i32
    %c0_i32_0 = arith.constant 0 : i32
    %c0_i32_1 = arith.constant 0 : i32
    return %c0_i32, %c0_i32_0 : i32, i32
  }
}

</mosaic_0001>

<llo_original>
// kernel: tpu_custom_call.1
$region0: #{tpu_custom_call.1}
  #allocation0 [shape = 'u32[]', space=smem, size = 0x4, offset = 0x4, fixed_abs, tag = 'smem constant byte address 0x4 - core index']
  #allocation1 [shape = 'u32[144,128]{1,0:T(1,128)}', space=vmem, size = 0x12000, scoped, tag = 'internal scratch']
  %s0 = inlined_call_operand.hbm [shape: bf16[2,16,16], index: 0, kind: input, shape index: {}]
  %s1 = inlined_call_operand.hbm [shape: bf16[16,128], index: 1, kind: input, shape index: {}]
  %s2 = inlined_call_operand.hbm [shape: bf16[3,128,128], index: 2, kind: input, shape index: {}]
  %s3 = inlined_call_operand.vmem [shape: f32[3,1,128], index: 3, kind: input, shape index: {}]
  %s4 = inlined_call_operand.hbm [shape: f32[16,128], index: 4, kind: output, shape index: {}]
  %s5 = sld [smem:[#allocation0]]
  $region38: #{tpu_custom_call.1} parent=0
    _
  %s7 = ssub.s32 1, %s5
  %s8 = scalar_select 0, %s7, %s5
  $region1: #{tpu_custom_call.1} parent=0
    #allocation2 [shape = 'u8[8192]{0}', space=vmem, size = 0x2000, scoped, tag = 'input window, operand 0, single buffered']
    #allocation3 [shape = 's32[1]{0}', space=sflag, size = 0x4, scoped, tag = 'scoped memory for tpu_custom_call.1']
    #allocation4 [shape = 's32[1]{0}', space=sflag, size = 0x4, scoped, tag = 'scoped memory for tpu_custom_call.1']
    #allocation5 [shape = 'u8[4096]{0}', space=vmem, size = 0x1000, scoped, tag = 'input window, operand 1, single buffered']
    #allocation6 [shape = 's32[1]{0}', space=sflag, size = 0x4, scoped, tag = 'scoped memory for tpu_custom_call.1']
    #allocation7 [shape = 'u8[98304]{0}', space=vmem, size = 0x18000, scoped, tag = 'input window, operand 2, single buffered']
    #allocation8 [shape = 'u8[8192]{0}', space=vmem, size = 0x2000, scoped, tag = 'output window, operand 0, single buffered']
    %9 = vsyncpa [#allocation3], 0
    %10 = vsyncpa [#allocation6], 0
    %11 = vsyncpa [#allocation4], 0
    // Predicated region
    $region2: #{tpu_custom_call.1} parent=1 // pred_check
      _
    $region3: #{tpu_custom_call.1} parent=1 // pred_check_branch
      %13 = sbr.rel (0) target = $region5
    $region4: #{tpu_custom_call.1} parent=1 // pred_region
      %s15 = ssub.s32 256, 256
      %16 = vsyncadd [#allocation3], %s15
      %s17 = sshll.u32 [#allocation2], 4
      %s18 = int_to_ptr.vmem [resolvable:$true] %s17
      %23 = dma.hbm_to_vmem [thread:$0]  %s0, 256, %s18, [#allocation3], 64, 64, 4
    $region5: #{tpu_custom_call.1} parent=1 // pred_fallthru
      _
    // Predicated region
    $region6: #{tpu_custom_call.1} parent=1 // pred_check
      _
    $region7: #{tpu_custom_call.1} parent=1 // pred_check_branch
      %25 = sbr.rel (0) target = $region9
    $region8: #{tpu_custom_call.1} parent=1 // pred_region
      %s27 = ssub.s32 128, 128
      %28 = vsyncadd [#allocation6], %s27
      %s29 = sshll.u32 [#allocation5], 4
      %s30 = int_to_ptr.vmem [resolvable:$true] %s29
      %35 = dma.hbm_to_vmem [thread:$0]  %s1, 128, %s30, [#allocation6], 64, 64, 4
    $region9: #{tpu_custom_call.1} parent=1 // pred_fallthru
      _
    // Predicated region
    $region10: #{tpu_custom_call.1} parent=1 // pred_check
      _
    $region11: #{tpu_custom_call.1} parent=1 // pred_check_branch
      %37 = sbr.rel (0) target = $region13
    $region12: #{tpu_custom_call.1} parent=1 // pred_region
      %s39 = ssub.s32 3072, 3072
      %40 = vsyncadd [#allocation6], %s39
      %s41 = sshll.u32 [#allocation7], 4
      %s42 = int_to_ptr.vmem [resolvable:$true] %s41
      %47 = dma.hbm_to_vmem [thread:$0]  %s2, 3072, %s42, [#allocation6], 64, 64, 4
    $region13: #{tpu_custom_call.1} parent=1 // pred_fallthru
      _
    // Predicated region
    $region14: #{tpu_custom_call.1} parent=1 // pred_check
      _
    $region15: #{tpu_custom_call.1} parent=1 // pred_check_branch
      %49 = sbr.rel (0) target = $region17
    $region16: #{tpu_custom_call.1} parent=1 // pred_region
      _
    $region17: #{tpu_custom_call.1} parent=1 // pred_fallthru
      _
    // Predicated region
    $region18: #{tpu_custom_call.1} parent=1 // pred_check
      _
    $region19: #{tpu_custom_call.1} parent=1 // pred_check_branch
      %51 = sbr.rel (0) target = $region21
    $region20: #{tpu_custom_call.1} parent=1 // pred_region
      %52 = dma.done [#allocation3], 256
    $region21: #{tpu_custom_call.1} parent=1 // pred_fallthru
      _
    // Predicated region
    $region22: #{tpu_custom_call.1} parent=1 // pred_check
      _
    $region23: #{tpu_custom_call.1} parent=1 // pred_check_branch
      %54 = sbr.rel (0) target = $region25
    $region24: #{tpu_custom_call.1} parent=1 // pred_region
      %55 = dma.done [#allocation6], 128
    $region25: #{tpu_custom_call.1} parent=1 // pred_fallthru
      _
    // Predicated region
    $region26: #{tpu_custom_call.1} parent=1 // pred_check
      _
    $region27: #{tpu_custom_call.1} parent=1 // pred_check_branch
      %57 = sbr.rel (0) target = $region29
    $region28: #{tpu_custom_call.1} parent=1 // pred_region
      %58 = dma.done [#allocation6], 3072
    $region29: #{tpu_custom_call.1} parent=1 // pred_fallthru
      _
    %v60 = vld [vmem:[#allocation5] sm:$0xf]
    %v61 = vld [vmem:[#allocation5 + $0x4] sm:$0xf]
    %v62 = vld [vmem:[#allocation7] sm:$0xf]
    %v63 = vld [vmem:[#allocation7 + $0x4] sm:$0xf]
    %v64 = vld [vmem:[#allocation7 + $0x8] sm:$0xf]
    %v65 = vld [vmem:[#allocation7 + $0xc] sm:$0xf]
    %v66 = vld [vmem:[#allocation7 + $0x10] sm:$0xf]
    %v67 = vld [vmem:[#allocation7 + $0x14] sm:$0xf]
    %v68 = vld [vmem:[#allocation7 + $0x18] sm:$0xf]
    %v69 = vld [vmem:[#allocation7 + $0x1c] sm:$0xf]
    %v70 = vld [vmem:[#allocation7 + $0x20] sm:$0xf]
    %v71 = vld [vmem:[#allocation7 + $0x24] sm:$0xf]
    %v72 = vld [vmem:[#allocation7 + $0x28] sm:$0xf]
    %v73 = vld [vmem:[#allocation7 + $0x2c] sm:$0xf]
    %v74 = vld [vmem:[#allocation7 + $0x30] sm:$0xf]
    %v75 = vld [vmem:[#allocation7 + $0x34] sm:$0xf]
    %v76 = vld [vmem:[#allocation7 + $0x38] sm:$0xf]
    %v77 = vld [vmem:[#allocation7 + $0x3c] sm:$0xf]
    %v78 = vld [vmem:[%s3] sm:$0x1]
    %v79 = vld [vmem:[#allocation2] sm:$0xf]
    %v80 = vld [vmem:[#allocation2 + $0x4] sm:$0xf]
    %v83 = vunpack.c.l.b16 %v79
    %v84 = vunpack.c.l.b16 %v80
    %v85 = vpack.c.b16 %v84, %v83
    %v88 = vunpack.c.l.b16 %v60
    %v89 = vunpack.c.l.b16 %v61
    %v90 = vpack.c.b16 %v89, %v88
    %vm92 = vcmask 130048
    %v94 = vsel %vm92, %v85, 0
    %96 = vmatprep.subr.bf16.mxu0 0
    %97 = vmatpush1.bf16.msra.mxu0 0
    %98 = vmatprep.subr.bf16.mxu0 0
    %99 = vmatpush1.bf16.msra.mxu0 0
    %100 = vmatprep.subr.bf16.mxu0 0
    %101 = vmatpush1.bf16.msra.mxu0 0
    %102 = vmatprep.subr.bf16.mxu0 0
    %103 = vmatpush1.bf16.msra.mxu0 0
    %104 = vmatprep.subr.bf16.mxu0 0
    %105 = vmatpush1.bf16.msra.mxu0 0
    %106 = vmatprep.subr.bf16.mxu0 0
    %107 = vmatpush1.bf16.msra.mxu0 0
    %108 = vmatprep.subr.bf16.mxu0 0
    %109 = vmatpush1.bf16.msra.mxu0 0
    %110 = vmatprep.subr.bf16.mxu0 0
    %111 = vmatpush1.bf16.msra.mxu0 %v90
    %112 = vmatprep.subr.bf16.mxu0 0
    %113 = vmatpush2.bf16.msra.mxu0 0
    %114 = vmatprep.subr.bf16.mxu0 0
    %115 = vmatpush2.bf16.msra.mxu0 0
    %116 = vmatprep.subr.bf16.mxu0 0
    %117 = vmatpush2.bf16.msra.mxu0 0
    %118 = vmatprep.subr.bf16.mxu0 0
    %119 = vmatpush2.bf16.msra.mxu0 0
    %120 = vmatprep.subr.bf16.mxu0 0
    %121 = vmatpush2.bf16.msra.mxu0 0
    %122 = vmatprep.subr.bf16.mxu0 0
    %123 = vmatpush2.bf16.msra.mxu0 0
    %124 = vmatprep.subr.bf16.mxu0 0
    %125 = vmatpush2.bf16.msra.mxu0 0
    %126 = vmatprep.subr.bf16.mxu0 0
    %127 = vmatpush2.bf16.msra.mxu0 0
    %128 = vmatprep.mubr.bf16.mxu0 0
    %129 = vmatmul.mubr.bf16.gmra.mxu0 %v94
    %v130 = vpop.f32.mrf.mxu0
    %v131 = vadd.f32 0.0, %v130
    %v132 = vpop.f32.mrf.mxu0
    %v133 = vpop.f32.mrf.mxu0
    %v134 = vadd.f32 0.0, %v133
    %v135 = vpop.f32.mrf.mxu0
    %136 = vdwg.mxu0
    %v137 = vpack.c.bf16 %v134, %v131
    %v139 = vlaneseq
    %v140 = vshrl.u32 %v139, 7
    %v141 = vsub.s32 0, %v140
    %v142 = vrot.slane %v78, %v141
    %v160 = vunpack.c.l.b16 %v62
    %v161 = vunpack.c.l.b16 %v63
    %v162 = vunpack.c.l.b16 %v64
    %v163 = vunpack.c.l.b16 %v65
    %v164 = vunpack.c.l.b16 %v66
    %v165 = vunpack.c.l.b16 %v67
    %v166 = vunpack.c.l.b16 %v68
    %v167 = vunpack.c.l.b16 %v69
    %v168 = vunpack.c.l.b16 %v70
    %v169 = vunpack.c.l.b16 %v71
    %v170 = vunpack.c.l.b16 %v72
    %v171 = vunpack.c.l.b16 %v73
    %v172 = vunpack.c.l.b16 %v74
    %v173 = vunpack.c.l.b16 %v75
    %v174 = vunpack.c.l.b16 %v76
    %v175 = vunpack.c.l.b16 %v77
    %v176 = vpack.c.b16 %v161, %v160
    %v177 = vpack.c.b16 %v163, %v162
    %v178 = vpack.c.b16 %v165, %v164
    %v179 = vpack.c.b16 %v167, %v166
    %v180 = vpack.c.b16 %v169, %v168
    %v181 = vpack.c.b16 %v171, %v170
    %v182 = vpack.c.b16 %v173, %v172
    %v183 = vpack.c.b16 %v175, %v174
    %192 = vmatprep.subr.bf16.mxu0 0
    %193 = vmatpush1.bf16.msra.mxu0 %v183
    %194 = vmatprep.subr.bf16.mxu0 0
    %195 = vmatpush1.bf16.msra.mxu0 %v182
    %196 = vmatprep.subr.bf16.mxu0 0
    %197 = vmatpush1.bf16.msra.mxu0 %v181
    %198 = vmatprep.subr.bf16.mxu0 0
    %199 = vmatpush1.bf16.msra.mxu0 %v180
    %200 = vmatprep.subr.bf16.mxu0 0
    %201 = vmatpush1.bf16.msra.mxu0 %v179
    %202 = vmatprep.subr.bf16.mxu0 0
    %203 = vmatpush1.bf16.msra.mxu0 %v178
    %204 = vmatprep.subr.bf16.mxu0 0
    %205 = vmatpush1.bf16.msra.mxu0 %v177
    %206 = vmatprep.subr.bf16.mxu0 0
    %207 = vmatpush1.bf16.msra.mxu0 %v176
    %208 = vmatprep.subr.bf16.mxu0 0
    %209 = vmatpush2.bf16.msra.mxu0 0
    %210 = vmatprep.subr.bf16.mxu0 0
    %211 = vmatpush2.bf16.msra.mxu0 0
    %212 = vmatprep.subr.bf16.mxu0 0
    %213 = vmatpush2.bf16.msra.mxu0 0
    %214 = vmatprep.subr.bf16.mxu0 0
    %215 = vmatpush2.bf16.msra.mxu0 0
    %216 = vmatprep.subr.bf16.mxu0 0
    %217 = vmatpush2.bf16.msra.mxu0 0
    %218 = vmatprep.subr.bf16.mxu0 0
    %219 = vmatpush2.bf16.msra.mxu0 0
    %220 = vmatprep.subr.bf16.mxu0 0
    %221 = vmatpush2.bf16.msra.mxu0 0
    %222 = vmatprep.subr.bf16.mxu0 0
    %223 = vmatpush2.bf16.msra.mxu0 0
    %224 = vmatprep.mubr.bf16.mxu0 0
    %225 = vmatmul.mubr.bf16.gmra.mxu0 %v137
    %v226 = vpop.f32.mrf.mxu0
    %v227 = vadd.f32 %v142, %v226
    %v228 = vpop.f32.mrf.mxu0
    %v229 = vpop.f32.mrf.mxu0
    %v230 = vadd.f32 %v142, %v229
    %v231 = vpop.f32.mrf.mxu0
    %232 = vdwg.mxu0
    %v233 = vadd.f32 %v227, %v230
    %v234 = vrot.slane %v233, 4
    %v235 = vadd.f32 %v233, %v234
    %v236 = vrot.slane %v235, 2
    %v237 = vadd.f32 %v235, %v236
    %v238 = vrot.slane %v237, 1
    %v239 = vadd.f32 %v237, %v238
    %v240 = vrcp.pop 16.0
    %v241 = vmul.f32 %v239, %v240
    %v242 = vsub.f32 %v227, %v241
    %v243 = vsub.f32 %v230, %v241
    %v244 = vmul.f32 %v242, %v242
    %v245 = vmul.f32 %v243, %v243
    %v246 = vadd.f32 %v244, %v245
    %v247 = vrot.slane %v246, 4
    %v248 = vadd.f32 %v246, %v247
    %v249 = vrot.slane %v248, 2
    %v250 = vadd.f32 %v248, %v249
    %v251 = vrot.slane %v250, 1
    %v252 = vadd.f32 %v250, %v251
    %v253 = vmul.f32 %v252, %v240
    %v254 = vadd.f32 %v253, 1e-05
    %v255 = vrsqrt.pop %v254
    %v256 = vmul.f32 %v242, %v255
    %v257 = vmul.f32 %v243, %v255
    %v258 = vmax.f32 %v256, 0.0
    %v259 = vmax.f32 %v257, 0.0
    %s260 = scalar_lea.vmem [#allocation7], 64
    %v261 = vld [vmem:[%s260] sm:$0xf]
    %v262 = vld [vmem:[%s260 + $0x4] sm:$0xf]
    %v263 = vld [vmem:[%s260 + $0x8] sm:$0xf]
    %v264 = vld [vmem:[%s260 + $0xc] sm:$0xf]
    %v265 = vld [vmem:[%s260 + $0x10] sm:$0xf]
    %v266 = vld [vmem:[%s260 + $0x14] sm:$0xf]
    %v267 = vld [vmem:[%s260 + $0x18] sm:$0xf]
    %v268 = vld [vmem:[%s260 + $0x1c] sm:$0xf]
    %v269 = vld [vmem:[%s260 + $0x20] sm:$0xf]
    %v270 = vld [vmem:[%s260 + $0x24] sm:$0xf]
    %v271 = vld [vmem:[%s260 + $0x28] sm:$0xf]
    %v272 = vld [vmem:[%s260 + $0x2c] sm:$0xf]
    %v273 = vld [vmem:[%s260 + $0x30] sm:$0xf]
    %v274 = vld [vmem:[%s260 + $0x34] sm:$0xf]
    %v275 = vld [vmem:[%s260 + $0x38] sm:$0xf]
    %v276 = vld [vmem:[%s260 + $0x3c] sm:$0xf]
    %s277 = scalar_lea.vmem %s3, 1
    %v278 = vld [vmem:[%s277] sm:$0x1]
    %v279 = vpack.c.bf16 %v259, %v258
    %v296 = vunpack.c.l.b16 %v261
    %v297 = vunpack.c.l.b16 %v262
    %v298 = vunpack.c.l.b16 %v263
    %v299 = vunpack.c.l.b16 %v264
    %v300 = vunpack.c.l.b16 %v265
    %v301 = vunpack.c.l.b16 %v266
    %v302 = vunpack.c.l.b16 %v267
    %v303 = vunpack.c.l.b16 %v268
    %v304 = vunpack.c.l.b16 %v269
    %v305 = vunpack.c.l.b16 %v270
    %v306 = vunpack.c.l.b16 %v271
    %v307 = vunpack.c.l.b16 %v272
    %v308 = vunpack.c.l.b16 %v273
    %v309 = vunpack.c.l.b16 %v274
    %v310 = vunpack.c.l.b16 %v275
    %v311 = vunpack.c.l.b16 %v276
    %v312 = vpack.c.b16 %v297, %v296
    %v313 = vpack.c.b16 %v299, %v298
    %v314 = vpack.c.b16 %v301, %v300
    %v315 = vpack.c.b16 %v303, %v302
    %v316 = vpack.c.b16 %v305, %v304
    %v317 = vpack.c.b16 %v307, %v306
    %v318 = vpack.c.b16 %v309, %v308
    %v319 = vpack.c.b16 %v311, %v310
    %328 = vmatprep.subr.bf16.mxu0 0
    %329 = vmatpush1.bf16.msra.mxu0 %v319
    %330 = vmatprep.subr.bf16.mxu0 0
    %331 = vmatpush1.bf16.msra.mxu0 %v318
    %332 = vmatprep.subr.bf16.mxu0 0
    %333 = vmatpush1.bf16.msra.mxu0 %v317
    %334 = vmatprep.subr.bf16.mxu0 0
    %335 = vmatpush1.bf16.msra.mxu0 %v316
    %336 = vmatprep.subr.bf16.mxu0 0
    %337 = vmatpush1.bf16.msra.mxu0 %v315
    %338 = vmatprep.subr.bf16.mxu0 0
    %339 = vmatpush1.bf16.msra.mxu0 %v314
    %340 = vmatprep.subr.bf16.mxu0 0
    %341 = vmatpush1.bf16.msra.mxu0 %v313
    %342 = vmatprep.subr.bf16.mxu0 0
    %343 = vmatpush1.bf16.msra.mxu0 %v312
    %344 = vmatprep.subr.bf16.mxu0 0
    %345 = vmatpush2.bf16.msra.mxu0 0
    %346 = vmatprep.subr.bf16.mxu0 0
    %347 = vmatpush2.bf16.msra.mxu0 0
    %348 = vmatprep.subr.bf16.mxu0 0
    %349 = vmatpush2.bf16.msra.mxu0 0
    %350 = vmatprep.subr.bf16.mxu0 0
    %351 = vmatpush2.bf16.msra.mxu0 0
    %352 = vmatprep.subr.bf16.mxu0 0
    %353 = vmatpush2.bf16.msra.mxu0 0
    %354 = vmatprep.subr.bf16.mxu0 0
    %355 = vmatpush2.bf16.msra.mxu0 0
    %356 = vmatprep.subr.bf16.mxu0 0
    %357 = vmatpush2.bf16.msra.mxu0 0
    %358 = vmatprep.subr.bf16.mxu0 0
    %359 = vmatpush2.bf16.msra.mxu0 0
    %360 = vmatprep.mubr.bf16.mxu0 0
    %361 = vmatmul.mubr.bf16.gmra.mxu0 %v279
    %v362 = vpop.f32.mrf.mxu0
    %v363 = vadd.f32 0.0, %v362
    %v364 = vpop.f32.mrf.mxu0
    %v365 = vpop.f32.mrf.mxu0
    %v366 = vadd.f32 0.0, %v365
    %v367 = vpop.f32.mrf.mxu0
    %368 = vdwg.mxu0
    %s369 = scalar_lea.vmem [#allocation2], 8
    %v370 = vld [vmem:[%s369] sm:$0xf]
    %v371 = vld [vmem:[%s369 + $0x4] sm:$0xf]
    %v372 = vpack.c.bf16 %v366, %v363
    %v374 = vlaneseq
    %v375 = vshrl.u32 %v374, 7
    %v376 = vsub.s32 0, %v375
    %v377 = vrot.slane %v278, %v376
    %v381 = vunpack.c.l.b16 %v370
    %v382 = vunpack.c.l.b16 %v371
    %v383 = vpack.c.b16 %v382, %v381
    %v385 = vsel %vm92, %v383, 0
    %387 = vmatprep.subr.bf16.mxu0 0
    %388 = vmatpush1.bf16.msra.mxu0 0
    %389 = vmatprep.subr.bf16.mxu0 0
    %390 = vmatpush1.bf16.msra.mxu0 0
    %391 = vmatprep.subr.bf16.mxu0 0
    %392 = vmatpush1.bf16.msra.mxu0 0
    %393 = vmatprep.subr.bf16.mxu0 0
    %394 = vmatpush1.bf16.msra.mxu0 0
    %395 = vmatprep.subr.bf16.mxu0 0
    %396 = vmatpush1.bf16.msra.mxu0 0
    %397 = vmatprep.subr.bf16.mxu0 0
    %398 = vmatpush1.bf16.msra.mxu0 0
    %399 = vmatprep.subr.bf16.mxu0 0
    %400 = vmatpush1.bf16.msra.mxu0 0
    %401 = vmatprep.subr.bf16.mxu0 0
    %402 = vmatpush1.bf16.msra.mxu0 %v372
    %403 = vmatprep.subr.bf16.mxu0 0
    %404 = vmatpush2.bf16.msra.mxu0 0
    %405 = vmatprep.subr.bf16.mxu0 0
    %406 = vmatpush2.bf16.msra.mxu0 0
    %407 = vmatprep.subr.bf16.mxu0 0
    %408 = vmatpush2.bf16.msra.mxu0 0
    %409 = vmatprep.subr.bf16.mxu0 0
    %410 = vmatpush2.bf16.msra.mxu0 0
    %411 = vmatprep.subr.bf16.mxu0 0
    %412 = vmatpush2.bf16.msra.mxu0 0
    %413 = vmatprep.subr.bf16.mxu0 0
    %414 = vmatpush2.bf16.msra.mxu0 0
    %415 = vmatprep.subr.bf16.mxu0 0
    %416 = vmatpush2.bf16.msra.mxu0 0
    %417 = vmatprep.subr.bf16.mxu0 0
    %418 = vmatpush2.bf16.msra.mxu0 0
    %419 = vmatprep.mubr.bf16.mxu0 0
    %420 = vmatmul.mubr.bf16.gmra.mxu0 %v385
    %v421 = vpop.f32.mrf.mxu0
    %v422 = vadd.f32 %v377, %v421
    %v423 = vpop.f32.mrf.mxu0
    %v424 = vpop.f32.mrf.mxu0
    %v425 = vadd.f32 %v377, %v424
    %v426 = vpop.f32.mrf.mxu0
    %427 = vdwg.mxu0
    %v428 = vadd.f32 %v422, %v425
    %v429 = vrot.slane %v428, 4
    %v430 = vadd.f32 %v428, %v429
    %v431 = vrot.slane %v430, 2
    %v432 = vadd.f32 %v430, %v431
    %v433 = vrot.slane %v432, 1
    %v434 = vadd.f32 %v432, %v433
    %v435 = vmul.f32 %v434, %v240
    %v436 = vsub.f32 %v422, %v435
    %v437 = vsub.f32 %v425, %v435
    %v438 = vmul.f32 %v436, %v436
    %v439 = vmul.f32 %v437, %v437
    %v440 = vadd.f32 %v438, %v439
    %v441 = vrot.slane %v440, 4
    %v442 = vadd.f32 %v440, %v441
    %v443 = vrot.slane %v442, 2
    %v444 = vadd.f32 %v442, %v443
    %v445 = vrot.slane %v444, 1
    %v446 = vadd.f32 %v444, %v445
    %v447 = vmul.f32 %v446, %v240
    %v448 = vadd.f32 %v447, 1e-05
    %v449 = vrsqrt.pop %v448
    %v450 = vmul.f32 %v436, %v449
    %v451 = vmul.f32 %v437, %v449
    %v452 = vmax.f32 %v450, 0.0
    %v453 = vmax.f32 %v451, 0.0
    %s454 = scalar_lea.vmem [#allocation7], 128
    %v455 = vld [vmem:[%s454] sm:$0xf]
    %v456 = vld [vmem:[%s454 + $0x4] sm:$0xf]
    %v457 = vld [vmem:[%s454 + $0x8] sm:$0xf]
    %v458 = vld [vmem:[%s454 + $0xc] sm:$0xf]
    %v459 = vld [vmem:[%s454 + $0x10] sm:$0xf]
    %v460 = vld [vmem:[%s454 + $0x14] sm:$0xf]
    %v461 = vld [vmem:[%s454 + $0x18] sm:$0xf]
    %v462 = vld [vmem:[%s454 + $0x1c] sm:$0xf]
    %v463 = vld [vmem:[%s454 + $0x20] sm:$0xf]
    %v464 = vld [vmem:[%s454 + $0x24] sm:$0xf]
    %v465 = vld [vmem:[%s454 + $0x28] sm:$0xf]
    %v466 = vld [vmem:[%s454 + $0x2c] sm:$0xf]
    %v467 = vld [vmem:[%s454 + $0x30] sm:$0xf]
    %v468 = vld [vmem:[%s454 + $0x34] sm:$0xf]
    %v469 = vld [vmem:[%s454 + $0x38] sm:$0xf]
    %v470 = vld [vmem:[%s454 + $0x3c] sm:$0xf]
    %s471 = scalar_lea.vmem %s3, 2
    %v472 = vld [vmem:[%s471] sm:$0x1]
    %v473 = vpack.c.bf16 %v453, %v452
    %v475 = vlaneseq
    %v476 = vshrl.u32 %v475, 7
    %v477 = vsub.s32 0, %v476
    %v478 = vrot.slane %v472, %v477
    %v496 = vunpack.c.l.b16 %v455
    %v497 = vunpack.c.l.b16 %v456
    %v498 = vunpack.c.l.b16 %v457
    %v499 = vunpack.c.l.b16 %v458
    %v500 = vunpack.c.l.b16 %v459
    %v501 = vunpack.c.l.b16 %v460
    %v502 = vunpack.c.l.b16 %v461
    %v503 = vunpack.c.l.b16 %v462
    %v504 = vunpack.c.l.b16 %v463
    %v505 = vunpack.c.l.b16 %v464
    %v506 = vunpack.c.l.b16 %v465
    %v507 = vunpack.c.l.b16 %v466
    %v508 = vunpack.c.l.b16 %v467
    %v509 = vunpack.c.l.b16 %v468
    %v510 = vunpack.c.l.b16 %v469
    %v511 = vunpack.c.l.b16 %v470
    %v512 = vpack.c.b16 %v497, %v496
    %v513 = vpack.c.b16 %v499, %v498
    %v514 = vpack.c.b16 %v501, %v500
    %v515 = vpack.c.b16 %v503, %v502
    %v516 = vpack.c.b16 %v505, %v504
    %v517 = vpack.c.b16 %v507, %v506
    %v518 = vpack.c.b16 %v509, %v508
    %v519 = vpack.c.b16 %v511, %v510
    %528 = vmatprep.subr.bf16.mxu0 0
    %529 = vmatpush1.bf16.msra.mxu0 %v519
    %530 = vmatprep.subr.bf16.mxu0 0
    %531 = vmatpush1.bf16.msra.mxu0 %v518
    %532 = vmatprep.subr.bf16.mxu0 0
    %533 = vmatpush1.bf16.msra.mxu0 %v517
    %534 = vmatprep.subr.bf16.mxu0 0
    %535 = vmatpush1.bf16.msra.mxu0 %v516
    %536 = vmatprep.subr.bf16.mxu0 0
    %537 = vmatpush1.bf16.msra.mxu0 %v515
    %538 = vmatprep.subr.bf16.mxu0 0
    %539 = vmatpush1.bf16.msra.mxu0 %v514
    %540 = vmatprep.subr.bf16.mxu0 0
    %541 = vmatpush1.bf16.msra.mxu0 %v513
    %542 = vmatprep.subr.bf16.mxu0 0
    %543 = vmatpush1.bf16.msra.mxu0 %v512
    %544 = vmatprep.subr.bf16.mxu0 0
    %545 = vmatpush2.bf16.msra.mxu0 0
    %546 = vmatprep.subr.bf16.mxu0 0
    %547 = vmatpush2.bf16.msra.mxu0 0
    %548 = vmatprep.subr.bf16.mxu0 0
    %549 = vmatpush2.bf16.msra.mxu0 0
    %550 = vmatprep.subr.bf16.mxu0 0
    %551 = vmatpush2.bf16.msra.mxu0 0
    %552 = vmatprep.subr.bf16.mxu0 0
    %553 = vmatpush2.bf16.msra.mxu0 0
    %554 = vmatprep.subr.bf16.mxu0 0
    %555 = vmatpush2.bf16.msra.mxu0 0
    %556 = vmatprep.subr.bf16.mxu0 0
    %557 = vmatpush2.bf16.msra.mxu0 0
    %558 = vmatprep.subr.bf16.mxu0 0
    %559 = vmatpush2.bf16.msra.mxu0 0
    %560 = vmatprep.mubr.bf16.mxu0 0
    %561 = vmatmul.mubr.bf16.gmra.mxu0 %v473
    %v562 = vpop.f32.mrf.mxu0
    %v563 = vadd.f32 %v478, %v562
    %v564 = vpop.f32.mrf.mxu0
    %v565 = vpop.f32.mrf.mxu0
    %v566 = vadd.f32 %v478, %v565
    %v567 = vpop.f32.mrf.mxu0
    %568 = vdwg.mxu0
    %v569 = vlaneseq
    %v570 = vand.u32 %v569, 127
    %vm571 = vcmp.lt.s32.totalorder %v570, 8
    %v572 = vsel %vm571, %v563, -1e+30
    %v573 = vsel %vm571, %v566, -1e+30
    %574 = vmax.xlane.f32.xlu0 %v572
    %v575 = vpop.xlane.xlu0 %574
    %576 = vmax.xlane.f32.xlu0 %v573
    %v577 = vpop.xlane.xlu0 %576
    %v578 = vsub.f32 %v572, %v575
    %v579 = vsub.f32 %v573, %v577
    %v580 = vmul.f32 %v578, 1.442695
    %v581 = vpow.pop %v580
    %v582 = vmul.f32 %v579, 1.442695
    %v583 = vpow.pop %v582
    %584 = vadd.xlane.f32.xlu0 %v581
    %v585 = vpop.xlane.xlu0 %584
    %586 = vadd.xlane.f32.xlu0 %v583
    %v587 = vpop.xlane.xlu0 %586
    %v588 = vlog2.pop %v585
    %v589 = vmul.f32 %v588, 0.6931472
    %v590 = vlog2.pop %v587
    %v591 = vmul.f32 %v590, 0.6931472
    %v592 = vsub.f32 %v578, %v589
    %v593 = vsub.f32 %v579, %v591
    %594 = vst [vmem:[#allocation8] sm:$0xff] %v592
    %595 = vst [vmem:[#allocation8 + $0x8] sm:$0xff] %v593
    // Predicated region
    $region30: #{tpu_custom_call.1} parent=1 // pred_check
      _
    $region31: #{tpu_custom_call.1} parent=1 // pred_check_branch
      %597 = sbr.rel (0) target = $region33
    $region32: #{tpu_custom_call.1} parent=1 // pred_region
      %s599 = ssub.s32 256, 256
      %600 = vsyncadd [#allocation4], %s599
      %s601 = sshll.u32 [#allocation8], 4
      %s602 = int_to_ptr.vmem [resolvable:$true] %s601
      %607 = dma.vmem_to_hbm [thread:$0]  %s602, 256, %s4, [#allocation4], 128, 128, 8
    $region33: #{tpu_custom_call.1} parent=1 // pred_fallthru
      _
    // Predicated region
    $region34: #{tpu_custom_call.1} parent=1 // pred_check
      _
    $region35: #{tpu_custom_call.1} parent=1 // pred_check_branch
      %609 = sbr.rel (0) target = $region37
    $region36: #{tpu_custom_call.1} parent=1 // pred_region
      %610 = dma.done [#allocation4], 256
    $region37: #{tpu_custom_call.1} parent=1 // pred_fallthru
      _
    %611 = vsyncpa [#allocation3], 1
    %612 = vsyncpa [#allocation6], 1
    %613 = vsyncpa [#allocation4], 1

</llo_original>
